<compile_context>
chip_gen: v7x
topology: tpu7x:2x2x1
jax: 0.10.0
libtpu: 0.0.40
codegen_flags: <defaults>
</compile_context>

<pallas_src>
import functools

import numpy as np

import jax
import jax.numpy as jnp
from jax.experimental import pallas as pl
from jax.experimental.pallas import tpu as pltpu


VMEM_LIMIT = 48 * 1024 * 1024   # explicit scoped-VMEM budget; safe on v5e/v6e/v7x


def _round_up(x, m):
    return (x + m - 1) // m * m


# ---------------------------------------------------------------------------
# Tiled bf16 matmul with f32 accumulator (fused wqkv projection and wo)
# ---------------------------------------------------------------------------

def _matmul_kernel(x_ref, w_ref, o_ref, acc_ref):
    @pl.when(pl.program_id(2) == 0)
    def _():
        acc_ref[...] = jnp.zeros_like(acc_ref)

    acc_ref[...] += jnp.dot(x_ref[...], w_ref[...],
                            preferred_element_type=jnp.float32)

    @pl.when(pl.program_id(2) == pl.num_programs(2) - 1)
    def _():
        o_ref[...] = acc_ref[...].astype(o_ref.dtype)


def pallas_matmul(x, w, out_dtype=None, bm=512, bn=1024, bk=1024):
    """x: (M, K) @ w: (K, N) -> (M, N).  bf16 inputs, f32 accumulation."""
    M, K = x.shape
    K2, N = w.shape
    assert K == K2
    out_dtype = out_dtype or x.dtype

    bm = min(bm, _round_up(M, 8))
    bn = min(bn, _round_up(N, 128))
    bk = min(bk, _round_up(K, 128))
    Mp, Kp, Np = _round_up(M, bm), _round_up(K, bk), _round_up(N, bn)
    xp = x if (Mp, Kp) == (M, K) else jnp.pad(x, ((0, Mp - M), (0, Kp - K)))
    wp = w if (Kp, Np) == (K, N) else jnp.pad(w, ((0, Kp - K), (0, Np - N)))

    out = pl.pallas_call(
        _matmul_kernel,
        out_shape=jax.ShapeDtypeStruct((Mp, Np), out_dtype),
        grid=(Mp // bm, Np // bn, Kp // bk),
        in_specs=[pl.BlockSpec((bm, bk), lambda i, j, k: (i, k)),
                  pl.BlockSpec((bk, bn), lambda i, j, k: (k, j))],
        out_specs=pl.BlockSpec((bm, bn), lambda i, j, k: (i, j)),
        scratch_shapes=[pltpu.VMEM((bm, bn), jnp.float32)],
        compiler_params=pltpu.CompilerParams(
            dimension_semantics=("parallel", "parallel", "arbitrary"),
            vmem_limit_bytes=VMEM_LIMIT),
    )(xp, wp)
    return out if (Mp, Np) == (M, N) else out[:M, :N]


# ---------------------------------------------------------------------------
# Rotary embedding kernel (interleaved-pair rotation, pair-swap via MXU permute)
# ---------------------------------------------------------------------------

def _rope_kernel(cos_ref, sin_ref, p_ref, x_ref, oq_ref, ok_ref, *, nh, nkv, hd):
    c = cos_ref[...]          # (bt, hd) f32, cos duplicated per pair
    s = sin_ref[...]          # (bt, hd) f32, sin with (-,+) signs per pair
    P = p_ref[...]            # (hd, hd) bf16 pair-swap permutation

    def rotate(xh):
        # out[2i]   = x[2i]*cos_i   - x[2i+1]*sin_i
        # out[2i+1] = x[2i+1]*cos_i + x[2i]  *sin_i
        sw = jnp.dot(xh, P, preferred_element_type=jnp.float32)
        return xh.astype(jnp.float32) * c + sw * s

    for h in range(nh):
        oq_ref[:, h * hd:(h + 1) * hd] = rotate(
            x_ref[:, h * hd:(h + 1) * hd]).astype(oq_ref.dtype)
    for h in range(nkv):
        ok_ref[:, h * hd:(h + 1) * hd] = rotate(
            x_ref[:, (nh + h) * hd:(nh + h + 1) * hd]).astype(ok_ref.dtype)


def pallas_rope(qkv, cos_full, sin_signed, swap_p, n_heads, n_kv_heads, head_dim, bt):
    """Rotates the Q|K columns of the fused QKV projection.  Returns (q_rot, k_rot)."""
    S_pad = qkv.shape[0]
    n_rot = n_heads + n_kv_heads
    kernel = functools.partial(_rope_kernel, nh=n_heads, nkv=n_kv_heads, hd=head_dim)
    return pl.pallas_call(
        kernel,
        out_shape=(jax.ShapeDtypeStruct((S_pad, n_heads * head_dim), qkv.dtype),
                   jax.ShapeDtypeStruct((S_pad, n_kv_heads * head_dim), qkv.dtype)),
        grid=(S_pad // bt,),
        in_specs=[pl.BlockSpec((bt, head_dim), lambda i: (i, 0)),               # cos
                  pl.BlockSpec((bt, head_dim), lambda i: (i, 0)),               # sin
                  pl.BlockSpec((head_dim, head_dim), lambda i: (0, 0)),         # swap P
                  pl.BlockSpec((bt, n_rot * head_dim), lambda i: (i, 0))],      # Q|K cols
        out_specs=(pl.BlockSpec((bt, n_heads * head_dim), lambda i: (i, 0)),
                   pl.BlockSpec((bt, n_kv_heads * head_dim), lambda i: (i, 0))),
        compiler_params=pltpu.CompilerParams(
            dimension_semantics=("parallel",),
            vmem_limit_bytes=VMEM_LIMIT),
    )(cos_full, sin_signed, swap_p, qkv)


# ---------------------------------------------------------------------------
# Flash attention: GQA-grouped, block-diagonal causal mask, KV fetch skipping
# ---------------------------------------------------------------------------

def _flash_attn_kernel(kvmin_ref, seg_ref, q_ref, k_ref, v_ref, o_ref,
                       m_scr, l_scr, acc_scr, *, bq, bk, repeats, hd):
    qi = pl.program_id(1)
    ki = pl.program_id(2)

    @pl.when(ki == 0)
    def _init():
        # Finite sentinel (not -inf): alpha = exp(m_prev - m_new) can never be NaN.
        m_scr[...] = jnp.full_like(m_scr, -1e30)
        l_scr[...] = jnp.zeros_like(l_scr)
        acc_scr[...] = jnp.zeros_like(acc_scr)

    # Compute only KV blocks inside [first block needed by this q-block, causal diag].
    @pl.when((ki <= qi) & (ki >= kvmin_ref[qi]))
    def _compute():
        k = k_ref[...]                                            # (bk, hd) bf16
        v = v_ref[...]                                            # (bk, hd) bf16
        g_q = qi * bq + jax.lax.broadcasted_iota(jnp.int32, (bq, 1), 0)
        g_k = ki * bk + jax.lax.broadcasted_iota(jnp.int32, (1, bk), 1)
        allowed = (g_k >= seg_ref[...]) & (g_k <= g_q)            # (bq, bk) bool

        for r in range(repeats):                                  # GQA group, unrolled
            s = jax.lax.dot_general(
                q_ref[:, r * hd:(r + 1) * hd], k, (((1,), (1,)), ((), ())),
                preferred_element_type=jnp.float32)               # (bq, bk) f32
            s = jnp.where(allowed, s, -1e30)

            m_prev = m_scr[r]
            m_new = jnp.maximum(m_prev, jnp.max(s, axis=-1, keepdims=True))
            alpha = jnp.exp(m_prev - m_new)
            p = jnp.exp(s - m_new)
            l_scr[r] = alpha * l_scr[r] + jnp.sum(p, axis=-1, keepdims=True)
            acc_scr[:, r * hd:(r + 1) * hd] = (
                alpha * acc_scr[:, r * hd:(r + 1) * hd] +
                jnp.dot(p.astype(v.dtype), v, preferred_element_type=jnp.float32))
            m_scr[r] = m_new

    @pl.when(ki == pl.num_programs(2) - 1)
    def _finalize():
        for r in range(repeats):
            inv = pl.reciprocal(l_scr[r], approx=True)            # (bq, 1)
            o_ref[:, r * hd:(r + 1) * hd] = (
                acc_scr[:, r * hd:(r + 1) * hd] * inv).astype(o_ref.dtype)


def pallas_flash_attention(q_rot, k_rot, v2d, seg_col, kvmin, n_heads, n_kv_heads,
                           head_dim, block):
    """q_rot: (S, Hq*D) scaled+rotated; k_rot: (S, Hkv*D) rotated; v2d: (S, Hkv*D)."""
    S_pad = q_rot.shape[0]
    repeats = n_heads // n_kv_heads
    nq = S_pad // block
    nk = S_pad // block
    kernel = functools.partial(_flash_attn_kernel, bq=block, bk=block,
                               repeats=repeats, hd=head_dim)

    def kv_index(kvh, qi, ki, kvmin_ref):
        # Clamp skipped steps onto the previous block index so their DMA is elided.
        return (jnp.minimum(jnp.maximum(ki, kvmin_ref[qi]), qi), kvh)

    grid_spec = pltpu.PrefetchScalarGridSpec(
        num_scalar_prefetch=1,
        grid=(n_kv_heads, nq, nk),
        in_specs=[
            pl.BlockSpec((block, 1), lambda kvh, qi, ki, kvmin: (qi, 0)),      # seg start
            pl.BlockSpec((block, repeats * head_dim),
                         lambda kvh, qi, ki, kvmin: (qi, kvh)),                # Q group
            pl.BlockSpec((block, head_dim), kv_index),                         # K
            pl.BlockSpec((block, head_dim), kv_index),                         # V
        ],
        out_specs=pl.BlockSpec((block, repeats * head_dim),
                               lambda kvh, qi, ki, kvmin: (qi, kvh)),
        scratch_shapes=[pltpu.VMEM((repeats, block, 1), jnp.float32),          # running max
                        pltpu.VMEM((repeats, block, 1), jnp.float32),          # running denom
                        pltpu.VMEM((block, repeats * head_dim), jnp.float32)]) # acc

    return pl.pallas_call(
        kernel,
        grid_spec=grid_spec,
        out_shape=jax.ShapeDtypeStruct((S_pad, n_heads * head_dim), q_rot.dtype),
        compiler_params=pltpu.CompilerParams(
            dimension_semantics=("parallel", "parallel", "arbitrary"),
            vmem_limit_bytes=VMEM_LIMIT),
    )(kvmin, seg_col, q_rot, k_rot, v2d)


# ---------------------------------------------------------------------------
# Batched in-place KV-cache write-through (per-sequence contiguous chunks)
# ---------------------------------------------------------------------------

def _kv_scatter_kernel(src_ref, len_ref, dst_ref, xk_ref, xv_ref,
                       kc_in_ref, vc_in_ref, kc_out_ref, vc_out_ref,
                       kbuf, vbuf, sems, *, chunk):
    del kc_in_ref, vc_in_ref      # aliased to the outputs; written via DMA below
    b = pl.program_id(0)
    c = pl.program_id(1)
    L = len_ref[b]
    n_chunks = (L + chunk - 1) // chunk
    c_eff = jnp.minimum(c, n_chunks - 1)
    # Last chunk is aligned to end exactly at L (may overlap-rewrite a few rows).
    off = jnp.minimum(c_eff * chunk, L - chunk)
    src = src_ref[b] + off
    dst = dst_ref[b] + off

    in_k = pltpu.make_async_copy(xk_ref.at[pl.ds(src, chunk)], kbuf, sems.at[0])
    in_v = pltpu.make_async_copy(xv_ref.at[pl.ds(src, chunk)], vbuf, sems.at[1])
    in_k.start(); in_v.start(); in_k.wait(); in_v.wait()

    out_k = pltpu.make_async_copy(kbuf, kc_out_ref.at[pl.ds(dst, chunk)], sems.at[0])
    out_v = pltpu.make_async_copy(vbuf, vc_out_ref.at[pl.ds(dst, chunk)], sems.at[1])
    out_k.start(); out_v.start(); out_k.wait(); out_v.wait()


def pallas_kv_cache_update(kc_flat, vc_flat, xk3, xv3, src_starts, lens, dst_starts,
                           *, chunk, max_chunks):
    """In-place scatter of fresh-prefill K/V rows into the flat caches."""
    batch = int(lens.shape[0])
    n_kv_heads, head_dim = xk3.shape[1], xk3.shape[2]
    kernel = functools.partial(_kv_scatter_kernel, chunk=chunk)
    grid_spec = pltpu.PrefetchScalarGridSpec(
        num_scalar_prefetch=3,
        grid=(batch, max_chunks),
        in_specs=[pl.BlockSpec(memory_space=pl.ANY)] * 4,
        out_specs=[pl.BlockSpec(memory_space=pl.ANY)] * 2,
        scratch_shapes=[pltpu.VMEM((chunk, n_kv_heads, head_dim), xk3.dtype),
                        pltpu.VMEM((chunk, n_kv_heads, head_dim), xv3.dtype),
                        pltpu.SemaphoreType.DMA((2,))])
    return pl.pallas_call(
        kernel,
        grid_spec=grid_spec,
        out_shape=[jax.ShapeDtypeStruct(kc_flat.shape, kc_flat.dtype),
                   jax.ShapeDtypeStruct(vc_flat.shape, vc_flat.dtype)],
        # Operand order: (src_starts, lens, dst_starts, xk, xv, k_cache, v_cache).
        # Alias indices count the scalar-prefetch operands as well.
        input_output_aliases={5: 0, 6: 1},
        compiler_params=pltpu.CompilerParams(
            dimension_semantics=("parallel", "arbitrary")),
    )(src_starts, lens, dst_starts, xk3, xv3, kc_flat, vc_flat)


# ---------------------------------------------------------------------------
# Host-side (tiny) RoPE tables / pair-swap matrix.  In a real model these are
# built once at init, not per forward call.
# ---------------------------------------------------------------------------

def rope_tables(pos, head_dim, theta):
    inv_freq = 1.0 / (theta ** (np.arange(0, head_dim, 2, dtype=np.float32) / head_dim))
    ang = pos.astype(np.float32)[:, None] * inv_freq[None, :]
    cos = np.cos(ang)
    sin = np.sin(ang)
    cos_full = np.repeat(cos, 2, axis=1)                       # (S, D) duplicated
    sin_full = np.repeat(sin, 2, axis=1)
    sign = np.tile(np.array([-1.0, 1.0], np.float32), head_dim // 2)
    return (jnp.asarray(cos_full, jnp.float32),
            jnp.asarray(sin_full * sign[None, :], jnp.float32))


def pair_swap_matrix(head_dim):
    idx = np.arange(head_dim)
    P = np.zeros((head_dim, head_dim), np.float32)
    P[idx, idx ^ 1] = 1.0
    return jnp.asarray(P, jnp.bfloat16)


# ---------------------------------------------------------------------------
# Attention.forward (fresh prefill) over packed sequences
# ---------------------------------------------------------------------------

def attention_forward(x, params, cache_k, cache_v, seqlens, args):
    S, dim = x.shape
    nh, nkv, hd = args["n_heads"], args["n_kv_heads"], args["head_dim"]
    scale = float(hd) ** -0.5
    assert hd % 128 == 0, "head_dim must be lane-aligned (Mixtral uses 128)"
    assert sum(seqlens) == S
    assert all(l > 0 for l in seqlens)

    # ---- packed-sequence metadata (host-side numpy; seqlens are static) ----
    seqlens = list(seqlens)
    starts = np.cumsum([0] + seqlens[:-1]).astype(np.int32)          # per-seq start row
    positions = np.concatenate([np.arange(l) for l in seqlens]).astype(np.int32)
    seg_start = np.concatenate(
        [np.full((l,), st, np.int32) for l, st in zip(seqlens, starts)])

    block = min(512, _round_up(S, 8))
    S_pad = _round_up(S, block)
    seg_start_p = np.concatenate([seg_start, np.arange(S, S_pad, dtype=np.int32)])
    pos_pad = np.concatenate([positions, np.zeros((S_pad - S,), np.int32)])
    nq = S_pad // block
    kvmin_np = (seg_start_p.reshape(nq, block).min(axis=1) // block).astype(np.int32)

    seg_col = jnp.asarray(seg_start_p.reshape(S_pad, 1))
    kvmin = jnp.asarray(kvmin_np)

    xb = x.astype(jnp.bfloat16)
    if S_pad != S:
        xb = jnp.pad(xb, ((0, S_pad - S), (0, 0)))

    # ---- fused QKV projection; softmax scale folded into wq (upstream) ----
    wq_scaled = (params["wq"].astype(jnp.float32) * scale).astype(jnp.bfloat16)
    wqkv = jnp.concatenate([wq_scaled, params["wk"], params["wv"]], axis=1)
    qkv = pallas_matmul(xb, wqkv)                  # (S_pad, (nh+2*nkv)*hd) bf16

    # ---- RoPE on the Q|K columns (Pallas kernel) ----
    cos_full, sin_signed = rope_tables(pos_pad, hd, args["rope_theta"])
    swap_p = pair_swap_matrix(hd)
    bt = 256 if block % 256 == 0 else block
    q_rot, k_rot = pallas_rope(qkv, cos_full, sin_signed, swap_p, nh, nkv, hd, bt)

    xv2d = qkv[:, (nh + nkv) * hd:]                # (S_pad, nkv*hd) bf16, un-rotated V

    # ---- fresh-prefill KV-cache write-through (in place, batched chunks) ----
    chunk = max(1, min(128, int(min(seqlens))))
    max_chunks = int(max((l + chunk - 1) // chunk for l in seqlens))
    dst_np = (np.arange(len(seqlens), dtype=np.int32) * np.int32(args["max_seq_len"]))
    new_ck, new_cv = pallas_kv_cache_update(
        cache_k.reshape(-1, nkv, hd), cache_v.reshape(-1, nkv, hd),
        k_rot.reshape(S_pad, nkv, hd), xv2d.reshape(S_pad, nkv, hd),
        jnp.asarray(starts), jnp.asarray(np.asarray(seqlens, np.int32)),
        jnp.asarray(dst_np), chunk=chunk, max_chunks=max_chunks)
    new_ck = new_ck.reshape(cache_k.shape)
    new_cv = new_cv.reshape(cache_v.shape)
    # TODO(synk): decode path (attend over cache.key/value) and chunked prefill
    # (interleave_kv with non-zero kv_seqlens) are not implemented here.

    # ---- flash attention (GQA grouped, causal + segment-aware block skipping) ----
    o = pallas_flash_attention(q_rot, k_rot, xv2d, seg_col, kvmin, nh, nkv, hd, block)

    # ---- output projection ----
    out = pallas_matmul(o, params["wo"], out_dtype=jnp.float32)[:S]
    return out, new_ck, new_cv


# ---------------------------------------------------------------------------
# Pure-JAX reference (mirrors the PyTorch module) for a correctness check
# ---------------------------------------------------------------------------

def precompute_rope_ref(head_dim, max_pos, theta):
    freqs = 1.0 / (theta ** (jnp.arange(0, head_dim, 2, dtype=jnp.float32) / head_dim))
    t = jnp.arange(max_pos, dtype=jnp.float32)
    ang = jnp.outer(t, freqs)
    return jnp.cos(ang), jnp.sin(ang)


def reference_attention(x, params, seqlens, args):
    S, dim = x.shape
    nh, nkv, hd = args["n_heads"], args["n_kv_heads"], args["head_dim"]
    f32 = jnp.float32
    positions = np.concatenate([np.arange(l) for l in seqlens]).astype(np.int32)
    seq_ids = np.concatenate(
        [np.full((l,), i) for i, l in enumerate(seqlens)]).astype(np.int32)

    cos, sin = precompute_rope_ref(hd, args["max_seq_len"], args["rope_theta"])
    cos, sin = cos[positions], sin[positions]

    xb = x.astype(jnp.bfloat16).astype(f32)
    xq = (xb @ params["wq"].astype(f32)).reshape(S, nh, hd)
    xk = (xb @ params["wk"].astype(f32)).reshape(S, nkv, hd)
    xv = (xb @ params["wv"].astype(f32)).reshape(S, nkv, hd)

    def rot(t):
        t2 = t.reshape(t.shape[0], t.shape[1], hd // 2, 2)
        x0, x1 = t2[..., 0], t2[..., 1]
        c, s = cos[:, None, :], sin[:, None, :]
        return jnp.stack([x0 * c - x1 * s, x0 * s + x1 * c], -1).reshape(t.shape)

    xq, xk_rot = rot(xq), rot(xk)
    key = jnp.repeat(xk_rot, nh // nkv, axis=1)
    val = jnp.repeat(xv, nh // nkv, axis=1)
    scores = jnp.einsum("qhd,khd->hqk", xq, key) * (float(hd) ** -0.5)
    pi, pj = positions[:, None], positions[None, :]
    allowed = (seq_ids[:, None] == seq_ids[None, :]) & (pj <= pi)
    scores = jnp.where(jnp.asarray(allowed)[None], scores, -1e30)
    p = jax.nn.softmax(scores, axis=-1)
    o = jnp.einsum("hqk,khd->qhd", p, val).reshape(S, nh * hd)
    return o @ params["wo"].astype(f32), xk_rot, xv


# ---------------------------------------------------------------------------
# Main
# ---------------------------------------------------------------------------

if __name__ == "__main__":
    args = dict(dim=256, head_dim=128, n_heads=4, n_kv_heads=2,
                rope_theta=10000.0, max_seq_len=16, max_batch_size=2)
    seqlens = [7, 5]
    S = sum(seqlens)
    dim, hd = args["dim"], args["head_dim"]
    nh, nkv = args["n_heads"], args["n_kv_heads"]

    key = jax.random.PRNGKey(0)
    kx, kq, kk, kv, ko = jax.random.split(key, 5)
    x = jax.random.normal(kx, (S, dim), jnp.float32)
    params = {
        "wq": (0.02 * jax.random.normal(kq, (dim, nh * hd), jnp.float32)).astype(jnp.bfloat16),
        "wk": (0.02 * jax.random.normal(kk, (dim, nkv * hd), jnp.float32)).astype(jnp.bfloat16),
        "wv": (0.02 * jax.random.normal(kv, (dim, nkv * hd), jnp.float32)).astype(jnp.bfloat16),
        "wo": (0.02 * jax.random.normal(ko, (nh * hd, dim), jnp.float32)).astype(jnp.bfloat16),
    }
    cache_k = jnp.zeros((args["max_batch_size"], args["max_seq_len"], nkv, hd), jnp.bfloat16)
    cache_v = jnp.zeros_like(cache_k)

    out, new_ck, new_cv = attention_forward(x, params, cache_k, cache_v, seqlens, args)
    out = jax.block_until_ready(out)

    assert out.shape == (S, dim) and out.dtype == jnp.float32
    assert bool(jnp.all(jnp.isfinite(out)))

    ref_out, ref_k, ref_v = reference_attention(x, params, seqlens, args)
    err = float(jnp.max(jnp.abs(out - ref_out)))
    assert err < 2e-2, f"attention output mismatch: max abs err {err}"

    # KV-cache scatter checks: written rows match rotated K / V, others untouched.
    positions = np.concatenate([np.arange(l) for l in seqlens]).astype(np.int32)
    seq_ids = np.concatenate(
        [np.full((l,), i) for i, l in enumerate(seqlens)]).astype(np.int32)
    rows = positions + seq_ids * args["max_seq_len"]
    ck_flat = new_ck.reshape(-1, nkv, hd).astype(jnp.float32)
    cv_flat = new_cv.reshape(-1, nkv, hd).astype(jnp.float32)
    untouched = np.setdiff1d(np.arange(ck_flat.shape[0]), rows)
    assert bool(jnp.all(ck_flat[untouched] == 0.0))
    assert bool(jnp.all(cv_flat[untouched] == 0.0))
    k_err = float(jnp.max(jnp.abs(ck_flat[rows] - ref_k)))
    v_err = float(jnp.max(jnp.abs(cv_flat[rows] - ref_v)))
    assert k_err < 3e-2 and v_err < 3e-2, f"cache mismatch: {k_err}, {v_err}"

    print("KERNEL_OK")
</pallas_src>

<mosaic_0001>
module attributes {stable_mosaic.version = 11 : i64} {
  func.func @_matmul_kernel(%arg0: i32, %arg1: i32, %arg2: i32, %arg3: memref<16x256xbf16, #tpu.memory_space<vmem>>, %arg4: memref<256x1024xbf16, #tpu.memory_space<vmem>>, %arg5: memref<16x1024xbf16, #tpu.memory_space<vmem>>, %arg6: memref<16x1024xf32, #tpu.memory_space<vmem>>) attributes {dimension_semantics = [#tpu.dimension_semantics<parallel>, #tpu.dimension_semantics<parallel>, #tpu.dimension_semantics<arbitrary>], iteration_bounds = array<i64: 1, 1, 1>, scalar_prefetch = 0 : i64, scratch_operands = 1 : i64, tpu.core_type = #tpu.core_type<tc>, window_params = [{transform_indices = @transform_0, window_bounds = array<i64: 16, 256>}, {transform_indices = @transform_1, window_bounds = array<i64: 256, 1024>}, {transform_indices = @transform_2, window_bounds = array<i64: 16, 1024>}]} {
    %c0_i32 = arith.constant 0 : i32
    %0 = arith.cmpi eq, %arg2, %c0_i32 : i32
    %1 = arith.extui %0 : i1 to i32
    %c0_i32_0 = arith.constant 0 : i32
    %2 = arith.cmpi ne, %1, %c0_i32_0 : i32
    scf.if %2 {
      %cst_10 = arith.constant 0.000000e+00 : f32
      %12 = vector.broadcast %cst_10 : f32 to vector<16x1024xf32>
      %c0_11 = arith.constant 0 : index
      %c0_12 = arith.constant 0 : index
      %13 = vector.load %arg6[%c0_11, %c0_12] : memref<16x1024xf32, #tpu.memory_space<vmem>>, vector<16x1024xf32>
      tpu.vector_store %arg6[%c0_11, %c0_12], %12 {strides = array<i32>} : memref<16x1024xf32, #tpu.memory_space<vmem>>, vector<16x1024xf32>,
    } else {
    }
    %c0 = arith.constant 0 : index
    %c0_1 = arith.constant 0 : index
    %3 = vector.load %arg6[%c0, %c0_1] : memref<16x1024xf32, #tpu.memory_space<vmem>>, vector<16x1024xf32>
    %c0_2 = arith.constant 0 : index
    %c0_3 = arith.constant 0 : index
    %4 = vector.load %arg3[%c0_2, %c0_3] : memref<16x256xbf16, #tpu.memory_space<vmem>>, vector<16x256xbf16>
    %c0_4 = arith.constant 0 : index
    %c0_5 = arith.constant 0 : index
    %5 = vector.load %arg4[%c0_4, %c0_5] : memref<256x1024xbf16, #tpu.memory_space<vmem>>, vector<256x1024xbf16>
    %cst = arith.constant dense<0.000000e+00> : vector<16x1024xf32>
    %6 = tpu.matmul %4, %5, %cst {dimension_numbers = #tpu.dot_dimension_numbers<[1], [0], [0], [1], [0, 0, 1, 1], [], []>} : vector<16x256xbf16>, vector<256x1024xbf16>, vector<16x1024xf32> -> vector<16x1024xf32>
    %7 = arith.addf %3, %6 : vector<16x1024xf32>
    %c0_6 = arith.constant 0 : index
    %c0_7 = arith.constant 0 : index
    %8 = vector.load %arg6[%c0_6, %c0_7] : memref<16x1024xf32, #tpu.memory_space<vmem>>, vector<16x1024xf32>
    tpu.vector_store %arg6[%c0_6, %c0_7], %7 {strides = array<i32>} : memref<16x1024xf32, #tpu.memory_space<vmem>>, vector<16x1024xf32>,
    %c0_i32_8 = arith.constant 0 : i32
    %9 = arith.cmpi eq, %arg2, %c0_i32_8 : i32
    %10 = arith.extui %9 : i1 to i32
    %c0_i32_9 = arith.constant 0 : i32
    %11 = arith.cmpi ne, %10, %c0_i32_9 : i32
    scf.if %11 {
      %c0_10 = arith.constant 0 : index
      %c0_11 = arith.constant 0 : index
      %12 = vector.load %arg6[%c0_10, %c0_11] : memref<16x1024xf32, #tpu.memory_space<vmem>>, vector<16x1024xf32>
      %13 = arith.truncf %12 : vector<16x1024xf32> to vector<16x1024xbf16>
      %c0_12 = arith.constant 0 : index
      %c0_13 = arith.constant 0 : index
      %14 = vector.load %arg5[%c0_12, %c0_13] : memref<16x1024xbf16, #tpu.memory_space<vmem>>, vector<16x1024xbf16>
      tpu.vector_store %arg5[%c0_12, %c0_13], %13 {strides = array<i32>} : memref<16x1024xbf16, #tpu.memory_space<vmem>>, vector<16x1024xbf16>,
    } else {
    }
    return
  }
  func.func @transform_0(%arg0: i32, %arg1: i32, %arg2: i32) -> (i32, i32) {
    %c0_i32 = arith.constant 0 : i32
    return %arg0, %arg2 : i32, i32
  }
  func.func @transform_1(%arg0: i32, %arg1: i32, %arg2: i32) -> (i32, i32) {
    %c0_i32 = arith.constant 0 : i32
    return %arg2, %arg1 : i32, i32
  }
  func.func @transform_2(%arg0: i32, %arg1: i32, %arg2: i32) -> (i32, i32) {
    %c0_i32 = arith.constant 0 : i32
    return %arg0, %arg1 : i32, i32
  }
}

</mosaic_0001>

<llo_original>
// kernel: tpu_custom_call.1
$region0: #{tpu_custom_call.1}
  #allocation0 [shape = 'u32[]', space=smem, size = 0x4, offset = 0x4, fixed_abs, tag = 'smem constant byte address 0x4 - core index']
  #allocation1 [shape = 'u32[144,128]{1,0:T(1,128)}', space=vmem, size = 0x12000, scoped, tag = 'internal scratch']
  #allocation2 [shape = 'f32[16,1024]{1,0:T(8,128)}', space=vmem, size = 0x10000, scoped, tag = 'scratch operand']
  %s0 = inlined_call_operand.hbm [shape: bf16[16,256], index: 0, kind: input, shape index: {}]
  %s1 = inlined_call_operand.hbm [shape: bf16[256,1024], index: 1, kind: input, shape index: {}]
  %s2 = inlined_call_operand.hbm [shape: bf16[16,1024], index: 2, kind: output, shape index: {}]
  %s3 = sld [smem:[#allocation0]]
  $region34: #{tpu_custom_call.1} parent=0
    _
  %s5 = ssub.s32 1, %s3
  %s6 = scalar_select 0, %s5, %s3
  $region1: #{tpu_custom_call.1} parent=0
    #allocation3 [shape = 'u8[8192]{0}', space=vmem, size = 0x2000, scoped, tag = 'input window, operand 0, single buffered']
    #allocation4 [shape = 's32[1]{0}', space=sflag, size = 0x4, scoped, tag = 'scoped memory for tpu_custom_call.1']
    #allocation5 [shape = 's32[1]{0}', space=sflag, size = 0x4, scoped, tag = 'scoped memory for tpu_custom_call.1']
    #allocation6 [shape = 'u8[524288]{0}', space=vmem, size = 0x80000, scoped, tag = 'input window, operand 1, single buffered']
    #allocation7 [shape = 's32[1]{0}', space=sflag, size = 0x4, scoped, tag = 'scoped memory for tpu_custom_call.1']
    #allocation8 [shape = 'u8[32768]{0}', space=vmem, size = 0x8000, scoped, tag = 'output window, operand 0, single buffered']
    %7 = vsyncpa [#allocation4], 0
    %8 = vsyncpa [#allocation7], 0
    %9 = vsyncpa [#allocation5], 0
    // Predicated region
    $region2: #{tpu_custom_call.1} parent=1 // pred_check
      _
    $region3: #{tpu_custom_call.1} parent=1 // pred_check_branch
      %11 = sbr.rel (0) target = $region5
    $region4: #{tpu_custom_call.1} parent=1 // pred_region
      %s13 = ssub.s32 256, 256
      %14 = vsyncadd [#allocation4], %s13
      %s15 = sshll.u32 [#allocation3], 4
      %s16 = int_to_ptr.vmem [resolvable:$true] %s15
      %21 = dma.hbm_to_vmem [thread:$0]  %s0, 256, %s16, [#allocation4], 128, 128, 8
    $region5: #{tpu_custom_call.1} parent=1 // pred_fallthru
      _
    // Predicated region
    $region6: #{tpu_custom_call.1} parent=1 // pred_check
      _
    $region7: #{tpu_custom_call.1} parent=1 // pred_check_branch
      %23 = sbr.rel (0) target = $region9
    $region8: #{tpu_custom_call.1} parent=1 // pred_region
      %s25 = ssub.s32 16384, 16384
      %26 = vsyncadd [#allocation7], %s25
      %s27 = sshll.u32 [#allocation6], 4
      %s28 = int_to_ptr.vmem [resolvable:$true] %s27
      %33 = dma.hbm_to_vmem [thread:$0]  %s1, 16384, %s28, [#allocation7], 512, 512, 32
    $region9: #{tpu_custom_call.1} parent=1 // pred_fallthru
      _
    // Predicated region
    $region10: #{tpu_custom_call.1} parent=1 // pred_check
      _
    $region11: #{tpu_custom_call.1} parent=1 // pred_check_branch
      %35 = sbr.rel (0) target = $region13
    $region12: #{tpu_custom_call.1} parent=1 // pred_region
      %36 = dma.done [#allocation4], 256
    $region13: #{tpu_custom_call.1} parent=1 // pred_fallthru
      _
    // Predicated region
    $region14: #{tpu_custom_call.1} parent=1 // pred_check
      _
    $region15: #{tpu_custom_call.1} parent=1 // pred_check_branch
      %38 = sbr.rel (0) target = $region17
    $region16: #{tpu_custom_call.1} parent=1 // pred_region
      %39 = dma.done [#allocation7], 16384
    $region17: #{tpu_custom_call.1} parent=1 // pred_fallthru
      _
    %p40 = scmp.eq.s32.totalorder 0, 0
    // Predicated region
    $region18: #{tpu_custom_call.1} parent=1 // pred_check
      %p41 = pneg %p40
    $region19: #{tpu_custom_call.1} parent=1 // pred_check_branch
      %43 = sbr.rel (%p41) target = $region21
    $region20: #{tpu_custom_call.1} parent=1 // pred_region
      %44 = vst [vmem:[#allocation2] sm:$0xff] 0.0
      %45 = vst [vmem:[#allocation2 + $0x8] sm:$0xff] 0.0
      %46 = vst [vmem:[#allocation2 + $0x10] sm:$0xff] 0.0
      %47 = vst [vmem:[#allocation2 + $0x18] sm:$0xff] 0.0
      %48 = vst [vmem:[#allocation2 + $0x20] sm:$0xff] 0.0
      %49 = vst [vmem:[#allocation2 + $0x28] sm:$0xff] 0.0
      %50 = vst [vmem:[#allocation2 + $0x30] sm:$0xff] 0.0
      %51 = vst [vmem:[#allocation2 + $0x38] sm:$0xff] 0.0
      %52 = vst [vmem:[#allocation2 + $0x40] sm:$0xff] 0.0
      %53 = vst [vmem:[#allocation2 + $0x48] sm:$0xff] 0.0
      %54 = vst [vmem:[#allocation2 + $0x50] sm:$0xff] 0.0
      %55 = vst [vmem:[#allocation2 + $0x58] sm:$0xff] 0.0
      %56 = vst [vmem:[#allocation2 + $0x60] sm:$0xff] 0.0
      %57 = vst [vmem:[#allocation2 + $0x68] sm:$0xff] 0.0
      %58 = vst [vmem:[#allocation2 + $0x70] sm:$0xff] 0.0
      %59 = vst [vmem:[#allocation2 + $0x78] sm:$0xff] 0.0
    $region21: #{tpu_custom_call.1} parent=1 // pred_fallthru
      _
    %v60 = vld [vmem:[#allocation2] sm:$0xff]
    %v61 = vld [vmem:[#allocation2 + $0x8] sm:$0xff]
    %v62 = vld [vmem:[#allocation2 + $0x10] sm:$0xff]
    %v63 = vld [vmem:[#allocation2 + $0x18] sm:$0xff]
    %v64 = vld [vmem:[#allocation2 + $0x20] sm:$0xff]
    %v65 = vld [vmem:[#allocation2 + $0x28] sm:$0xff]
    %v66 = vld [vmem:[#allocation2 + $0x30] sm:$0xff]
    %v67 = vld [vmem:[#allocation2 + $0x38] sm:$0xff]
    %v68 = vld [vmem:[#allocation2 + $0x40] sm:$0xff]
    %v69 = vld [vmem:[#allocation2 + $0x48] sm:$0xff]
    %v70 = vld [vmem:[#allocation2 + $0x50] sm:$0xff]
    %v71 = vld [vmem:[#allocation2 + $0x58] sm:$0xff]
    %v72 = vld [vmem:[#allocation2 + $0x60] sm:$0xff]
    %v73 = vld [vmem:[#allocation2 + $0x68] sm:$0xff]
    %v74 = vld [vmem:[#allocation2 + $0x70] sm:$0xff]
    %v75 = vld [vmem:[#allocation2 + $0x78] sm:$0xff]
    %v76 = vld [vmem:[#allocation3] sm:$0xff]
    %v77 = vld [vmem:[#allocation3 + $0x8] sm:$0xff]
    %v78 = vld [vmem:[#allocation6] sm:$0xff]
    %v79 = vld [vmem:[#allocation6 + $0x8] sm:$0xff]
    %v80 = vld [vmem:[#allocation6 + $0x10] sm:$0xff]
    %v81 = vld [vmem:[#allocation6 + $0x18] sm:$0xff]
    %v82 = vld [vmem:[#allocation6 + $0x20] sm:$0xff]
    %v83 = vld [vmem:[#allocation6 + $0x28] sm:$0xff]
    %v84 = vld [vmem:[#allocation6 + $0x30] sm:$0xff]
    %v85 = vld [vmem:[#allocation6 + $0x38] sm:$0xff]
    %v86 = vld [vmem:[#allocation6 + $0x40] sm:$0xff]
    %v87 = vld [vmem:[#allocation6 + $0x48] sm:$0xff]
    %v88 = vld [vmem:[#allocation6 + $0x50] sm:$0xff]
    %v89 = vld [vmem:[#allocation6 + $0x58] sm:$0xff]
    %v90 = vld [vmem:[#allocation6 + $0x60] sm:$0xff]
    %v91 = vld [vmem:[#allocation6 + $0x68] sm:$0xff]
    %v92 = vld [vmem:[#allocation6 + $0x70] sm:$0xff]
    %v93 = vld [vmem:[#allocation6 + $0x78] sm:$0xff]
    %v94 = vld [vmem:[#allocation6 + $0x80] sm:$0xff]
    %v95 = vld [vmem:[#allocation6 + $0x88] sm:$0xff]
    %v96 = vld [vmem:[#allocation6 + $0x90] sm:$0xff]
    %v97 = vld [vmem:[#allocation6 + $0x98] sm:$0xff]
    %v98 = vld [vmem:[#allocation6 + $0xa0] sm:$0xff]
    %v99 = vld [vmem:[#allocation6 + $0xa8] sm:$0xff]
    %v100 = vld [vmem:[#allocation6 + $0xb0] sm:$0xff]
    %v101 = vld [vmem:[#allocation6 + $0xb8] sm:$0xff]
    %v102 = vld [vmem:[#allocation6 + $0xc0] sm:$0xff]
    %v103 = vld [vmem:[#allocation6 + $0xc8] sm:$0xff]
    %v104 = vld [vmem:[#allocation6 + $0xd0] sm:$0xff]
    %v105 = vld [vmem:[#allocation6 + $0xd8] sm:$0xff]
    %v106 = vld [vmem:[#allocation6 + $0xe0] sm:$0xff]
    %v107 = vld [vmem:[#allocation6 + $0xe8] sm:$0xff]
    %v108 = vld [vmem:[#allocation6 + $0xf0] sm:$0xff]
    %v109 = vld [vmem:[#allocation6 + $0xf8] sm:$0xff]
    %v110 = vld [vmem:[#allocation6 + $0x100] sm:$0xff]
    %v111 = vld [vmem:[#allocation6 + $0x108] sm:$0xff]
    %v112 = vld [vmem:[#allocation6 + $0x110] sm:$0xff]
    %v113 = vld [vmem:[#allocation6 + $0x118] sm:$0xff]
    %v114 = vld [vmem:[#allocation6 + $0x120] sm:$0xff]
    %v115 = vld [vmem:[#allocation6 + $0x128] sm:$0xff]
    %v116 = vld [vmem:[#allocation6 + $0x130] sm:$0xff]
    %v117 = vld [vmem:[#allocation6 + $0x138] sm:$0xff]
    %v118 = vld [vmem:[#allocation6 + $0x140] sm:$0xff]
    %v119 = vld [vmem:[#allocation6 + $0x148] sm:$0xff]
    %v120 = vld [vmem:[#allocation6 + $0x150] sm:$0xff]
    %v121 = vld [vmem:[#allocation6 + $0x158] sm:$0xff]
    %v122 = vld [vmem:[#allocation6 + $0x160] sm:$0xff]
    %v123 = vld [vmem:[#allocation6 + $0x168] sm:$0xff]
    %v124 = vld [vmem:[#allocation6 + $0x170] sm:$0xff]
    %v125 = vld [vmem:[#allocation6 + $0x178] sm:$0xff]
    %v126 = vld [vmem:[#allocation6 + $0x180] sm:$0xff]
    %v127 = vld [vmem:[#allocation6 + $0x188] sm:$0xff]
    %v128 = vld [vmem:[#allocation6 + $0x190] sm:$0xff]
    %v129 = vld [vmem:[#allocation6 + $0x198] sm:$0xff]
    %v130 = vld [vmem:[#allocation6 + $0x1a0] sm:$0xff]
    %v131 = vld [vmem:[#allocation6 + $0x1a8] sm:$0xff]
    %v132 = vld [vmem:[#allocation6 + $0x1b0] sm:$0xff]
    %v133 = vld [vmem:[#allocation6 + $0x1b8] sm:$0xff]
    %v134 = vld [vmem:[#allocation6 + $0x1c0] sm:$0xff]
    %v135 = vld [vmem:[#allocation6 + $0x1c8] sm:$0xff]
    %v136 = vld [vmem:[#allocation6 + $0x1d0] sm:$0xff]
    %v137 = vld [vmem:[#allocation6 + $0x1d8] sm:$0xff]
    %v138 = vld [vmem:[#allocation6 + $0x1e0] sm:$0xff]
    %v139 = vld [vmem:[#allocation6 + $0x1e8] sm:$0xff]
    %v140 = vld [vmem:[#allocation6 + $0x1f0] sm:$0xff]
    %v141 = vld [vmem:[#allocation6 + $0x1f8] sm:$0xff]
    %v142 = vld [vmem:[#allocation6 + $0x200] sm:$0xff]
    %v143 = vld [vmem:[#allocation6 + $0x208] sm:$0xff]
    %v144 = vld [vmem:[#allocation6 + $0x210] sm:$0xff]
    %v145 = vld [vmem:[#allocation6 + $0x218] sm:$0xff]
    %v146 = vld [vmem:[#allocation6 + $0x220] sm:$0xff]
    %v147 = vld [vmem:[#allocation6 + $0x228] sm:$0xff]
    %v148 = vld [vmem:[#allocation6 + $0x230] sm:$0xff]
    %v149 = vld [vmem:[#allocation6 + $0x238] sm:$0xff]
    %v150 = vld [vmem:[#allocation6 + $0x240] sm:$0xff]
    %v151 = vld [vmem:[#allocation6 + $0x248] sm:$0xff]
    %v152 = vld [vmem:[#allocation6 + $0x250] sm:$0xff]
    %v153 = vld [vmem:[#allocation6 + $0x258] sm:$0xff]
    %v154 = vld [vmem:[#allocation6 + $0x260] sm:$0xff]
    %v155 = vld [vmem:[#allocation6 + $0x268] sm:$0xff]
    %v156 = vld [vmem:[#allocation6 + $0x270] sm:$0xff]
    %v157 = vld [vmem:[#allocation6 + $0x278] sm:$0xff]
    %v158 = vld [vmem:[#allocation6 + $0x280] sm:$0xff]
    %v159 = vld [vmem:[#allocation6 + $0x288] sm:$0xff]
    %v160 = vld [vmem:[#allocation6 + $0x290] sm:$0xff]
    %v161 = vld [vmem:[#allocation6 + $0x298] sm:$0xff]
    %v162 = vld [vmem:[#allocation6 + $0x2a0] sm:$0xff]
    %v163 = vld [vmem:[#allocation6 + $0x2a8] sm:$0xff]
    %v164 = vld [vmem:[#allocation6 + $0x2b0] sm:$0xff]
    %v165 = vld [vmem:[#allocation6 + $0x2b8] sm:$0xff]
    %v166 = vld [vmem:[#allocation6 + $0x2c0] sm:$0xff]
    %v167 = vld [vmem:[#allocation6 + $0x2c8] sm:$0xff]
    %v168 = vld [vmem:[#allocation6 + $0x2d0] sm:$0xff]
    %v169 = vld [vmem:[#allocation6 + $0x2d8] sm:$0xff]
    %v170 = vld [vmem:[#allocation6 + $0x2e0] sm:$0xff]
    %v171 = vld [vmem:[#allocation6 + $0x2e8] sm:$0xff]
    %v172 = vld [vmem:[#allocation6 + $0x2f0] sm:$0xff]
    %v173 = vld [vmem:[#allocation6 + $0x2f8] sm:$0xff]
    %v174 = vld [vmem:[#allocation6 + $0x300] sm:$0xff]
    %v175 = vld [vmem:[#allocation6 + $0x308] sm:$0xff]
    %v176 = vld [vmem:[#allocation6 + $0x310] sm:$0xff]
    %v177 = vld [vmem:[#allocation6 + $0x318] sm:$0xff]
    %v178 = vld [vmem:[#allocation6 + $0x320] sm:$0xff]
    %v179 = vld [vmem:[#allocation6 + $0x328] sm:$0xff]
    %v180 = vld [vmem:[#allocation6 + $0x330] sm:$0xff]
    %v181 = vld [vmem:[#allocation6 + $0x338] sm:$0xff]
    %v182 = vld [vmem:[#allocation6 + $0x340] sm:$0xff]
    %v183 = vld [vmem:[#allocation6 + $0x348] sm:$0xff]
    %v184 = vld [vmem:[#allocation6 + $0x350] sm:$0xff]
    %v185 = vld [vmem:[#allocation6 + $0x358] sm:$0xff]
    %v186 = vld [vmem:[#allocation6 + $0x360] sm:$0xff]
    %v187 = vld [vmem:[#allocation6 + $0x368] sm:$0xff]
    %v188 = vld [vmem:[#allocation6 + $0x370] sm:$0xff]
    %v189 = vld [vmem:[#allocation6 + $0x378] sm:$0xff]
    %v190 = vld [vmem:[#allocation6 + $0x380] sm:$0xff]
    %v191 = vld [vmem:[#allocation6 + $0x388] sm:$0xff]
    %v192 = vld [vmem:[#allocation6 + $0x390] sm:$0xff]
    %v193 = vld [vmem:[#allocation6 + $0x398] sm:$0xff]
    %v194 = vld [vmem:[#allocation6 + $0x3a0] sm:$0xff]
    %v195 = vld [vmem:[#allocation6 + $0x3a8] sm:$0xff]
    %v196 = vld [vmem:[#allocation6 + $0x3b0] sm:$0xff]
    %v197 = vld [vmem:[#allocation6 + $0x3b8] sm:$0xff]
    %v198 = vld [vmem:[#allocation6 + $0x3c0] sm:$0xff]
    %v199 = vld [vmem:[#allocation6 + $0x3c8] sm:$0xff]
    %v200 = vld [vmem:[#allocation6 + $0x3d0] sm:$0xff]
    %v201 = vld [vmem:[#allocation6 + $0x3d8] sm:$0xff]
    %v202 = vld [vmem:[#allocation6 + $0x3e0] sm:$0xff]
    %v203 = vld [vmem:[#allocation6 + $0x3e8] sm:$0xff]
    %v204 = vld [vmem:[#allocation6 + $0x3f0] sm:$0xff]
    %v205 = vld [vmem:[#allocation6 + $0x3f8] sm:$0xff]
    %v208 = vunpack.c.l.b16 %v76
    %v209 = vunpack.c.h.b16 %v76
    %v210 = vunpack.c.l.b16 %v77
    %v211 = vunpack.c.h.b16 %v77
    %v212 = vpack.c.b16 %v210, %v208
    %v213 = vpack.c.b16 %v211, %v209
    %v344 = vunpack.c.l.b16 %v78
    %v345 = vunpack.c.h.b16 %v78
    %v346 = vunpack.c.l.b16 %v79
    %v347 = vunpack.c.h.b16 %v79
    %v348 = vunpack.c.l.b16 %v80
    %v349 = vunpack.c.h.b16 %v80
    %v350 = vunpack.c.l.b16 %v81
    %v351 = vunpack.c.h.b16 %v81
    %v352 = vunpack.c.l.b16 %v82
    %v353 = vunpack.c.h.b16 %v82
    %v354 = vunpack.c.l.b16 %v83
    %v355 = vunpack.c.h.b16 %v83
    %v356 = vunpack.c.l.b16 %v84
    %v357 = vunpack.c.h.b16 %v84
    %v358 = vunpack.c.l.b16 %v85
    %v359 = vunpack.c.h.b16 %v85
    %v360 = vunpack.c.l.b16 %v86
    %v361 = vunpack.c.h.b16 %v86
    %v362 = vunpack.c.l.b16 %v87
    %v363 = vunpack.c.h.b16 %v87
    %v364 = vunpack.c.l.b16 %v88
    %v365 = vunpack.c.h.b16 %v88
    %v366 = vunpack.c.l.b16 %v89
    %v367 = vunpack.c.h.b16 %v89
    %v368 = vunpack.c.l.b16 %v90
    %v369 = vunpack.c.h.b16 %v90
    %v370 = vunpack.c.l.b16 %v91
    %v371 = vunpack.c.h.b16 %v91
    %v372 = vunpack.c.l.b16 %v92
    %v373 = vunpack.c.h.b16 %v92
    %v374 = vunpack.c.l.b16 %v93
    %v375 = vunpack.c.h.b16 %v93
    %v376 = vunpack.c.l.b16 %v94
    %v377 = vunpack.c.h.b16 %v94
    %v378 = vunpack.c.l.b16 %v95
    %v379 = vunpack.c.h.b16 %v95
    %v380 = vunpack.c.l.b16 %v96
    %v381 = vunpack.c.h.b16 %v96
    %v382 = vunpack.c.l.b16 %v97
    %v383 = vunpack.c.h.b16 %v97
    %v384 = vunpack.c.l.b16 %v98
    %v385 = vunpack.c.h.b16 %v98
    %v386 = vunpack.c.l.b16 %v99
    %v387 = vunpack.c.h.b16 %v99
    %v388 = vunpack.c.l.b16 %v100
    %v389 = vunpack.c.h.b16 %v100
    %v390 = vunpack.c.l.b16 %v101
    %v391 = vunpack.c.h.b16 %v101
    %v392 = vunpack.c.l.b16 %v102
    %v393 = vunpack.c.h.b16 %v102
    %v394 = vunpack.c.l.b16 %v103
    %v395 = vunpack.c.h.b16 %v103
    %v396 = vunpack.c.l.b16 %v104
    %v397 = vunpack.c.h.b16 %v104
    %v398 = vunpack.c.l.b16 %v105
    %v399 = vunpack.c.h.b16 %v105
    %v400 = vunpack.c.l.b16 %v106
    %v401 = vunpack.c.h.b16 %v106
    %v402 = vunpack.c.l.b16 %v107
    %v403 = vunpack.c.h.b16 %v107
    %v404 = vunpack.c.l.b16 %v108
    %v405 = vunpack.c.h.b16 %v108
    %v406 = vunpack.c.l.b16 %v109
    %v407 = vunpack.c.h.b16 %v109
    %v408 = vunpack.c.l.b16 %v110
    %v409 = vunpack.c.h.b16 %v110
    %v410 = vunpack.c.l.b16 %v111
    %v411 = vunpack.c.h.b16 %v111
    %v412 = vunpack.c.l.b16 %v112
    %v413 = vunpack.c.h.b16 %v112
    %v414 = vunpack.c.l.b16 %v113
    %v415 = vunpack.c.h.b16 %v113
    %v416 = vunpack.c.l.b16 %v114
    %v417 = vunpack.c.h.b16 %v114
    %v418 = vunpack.c.l.b16 %v115
    %v419 = vunpack.c.h.b16 %v115
    %v420 = vunpack.c.l.b16 %v116
    %v421 = vunpack.c.h.b16 %v116
    %v422 = vunpack.c.l.b16 %v117
    %v423 = vunpack.c.h.b16 %v117
    %v424 = vunpack.c.l.b16 %v118
    %v425 = vunpack.c.h.b16 %v118
    %v426 = vunpack.c.l.b16 %v119
    %v427 = vunpack.c.h.b16 %v119
    %v428 = vunpack.c.l.b16 %v120
    %v429 = vunpack.c.h.b16 %v120
    %v430 = vunpack.c.l.b16 %v121
    %v431 = vunpack.c.h.b16 %v121
    %v432 = vunpack.c.l.b16 %v122
    %v433 = vunpack.c.h.b16 %v122
    %v434 = vunpack.c.l.b16 %v123
    %v435 = vunpack.c.h.b16 %v123
    %v436 = vunpack.c.l.b16 %v124
    %v437 = vunpack.c.h.b16 %v124
    %v438 = vunpack.c.l.b16 %v125
    %v439 = vunpack.c.h.b16 %v125
    %v440 = vunpack.c.l.b16 %v126
    %v441 = vunpack.c.h.b16 %v126
    %v442 = vunpack.c.l.b16 %v127
    %v443 = vunpack.c.h.b16 %v127
    %v444 = vunpack.c.l.b16 %v128
    %v445 = vunpack.c.h.b16 %v128
    %v446 = vunpack.c.l.b16 %v129
    %v447 = vunpack.c.h.b16 %v129
    %v448 = vunpack.c.l.b16 %v130
    %v449 = vunpack.c.h.b16 %v130
    %v450 = vunpack.c.l.b16 %v131
    %v451 = vunpack.c.h.b16 %v131
    %v452 = vunpack.c.l.b16 %v132
    %v453 = vunpack.c.h.b16 %v132
    %v454 = vunpack.c.l.b16 %v133
    %v455 = vunpack.c.h.b16 %v133
    %v456 = vunpack.c.l.b16 %v134
    %v457 = vunpack.c.h.b16 %v134
    %v458 = vunpack.c.l.b16 %v135
    %v459 = vunpack.c.h.b16 %v135
    %v460 = vunpack.c.l.b16 %v136
    %v461 = vunpack.c.h.b16 %v136
    %v462 = vunpack.c.l.b16 %v137
    %v463 = vunpack.c.h.b16 %v137
    %v464 = vunpack.c.l.b16 %v138
    %v465 = vunpack.c.h.b16 %v138
    %v466 = vunpack.c.l.b16 %v139
    %v467 = vunpack.c.h.b16 %v139
    %v468 = vunpack.c.l.b16 %v140
    %v469 = vunpack.c.h.b16 %v140
    %v470 = vunpack.c.l.b16 %v141
    %v471 = vunpack.c.h.b16 %v141
    %v472 = vunpack.c.l.b16 %v142
    %v473 = vunpack.c.h.b16 %v142
    %v474 = vunpack.c.l.b16 %v143
    %v475 = vunpack.c.h.b16 %v143
    %v476 = vunpack.c.l.b16 %v144
    %v477 = vunpack.c.h.b16 %v144
    %v478 = vunpack.c.l.b16 %v145
    %v479 = vunpack.c.h.b16 %v145
    %v480 = vunpack.c.l.b16 %v146
    %v481 = vunpack.c.h.b16 %v146
    %v482 = vunpack.c.l.b16 %v147
    %v483 = vunpack.c.h.b16 %v147
    %v484 = vunpack.c.l.b16 %v148
    %v485 = vunpack.c.h.b16 %v148
    %v486 = vunpack.c.l.b16 %v149
    %v487 = vunpack.c.h.b16 %v149
    %v488 = vunpack.c.l.b16 %v150
    %v489 = vunpack.c.h.b16 %v150
    %v490 = vunpack.c.l.b16 %v151
    %v491 = vunpack.c.h.b16 %v151
    %v492 = vunpack.c.l.b16 %v152
    %v493 = vunpack.c.h.b16 %v152
    %v494 = vunpack.c.l.b16 %v153
    %v495 = vunpack.c.h.b16 %v153
    %v496 = vunpack.c.l.b16 %v154
    %v497 = vunpack.c.h.b16 %v154
    %v498 = vunpack.c.l.b16 %v155
    %v499 = vunpack.c.h.b16 %v155
    %v500 = vunpack.c.l.b16 %v156
    %v501 = vunpack.c.h.b16 %v156
    %v502 = vunpack.c.l.b16 %v157
    %v503 = vunpack.c.h.b16 %v157
    %v504 = vunpack.c.l.b16 %v158
    %v505 = vunpack.c.h.b16 %v158
    %v506 = vunpack.c.l.b16 %v159
    %v507 = vunpack.c.h.b16 %v159
    %v508 = vunpack.c.l.b16 %v160
    %v509 = vunpack.c.h.b16 %v160
    %v510 = vunpack.c.l.b16 %v161
    %v511 = vunpack.c.h.b16 %v161
    %v512 = vunpack.c.l.b16 %v162
    %v513 = vunpack.c.h.b16 %v162
    %v514 = vunpack.c.l.b16 %v163
    %v515 = vunpack.c.h.b16 %v163
    %v516 = vunpack.c.l.b16 %v164
    %v517 = vunpack.c.h.b16 %v164
    %v518 = vunpack.c.l.b16 %v165
    %v519 = vunpack.c.h.b16 %v165
    %v520 = vunpack.c.l.b16 %v166
    %v521 = vunpack.c.h.b16 %v166
    %v522 = vunpack.c.l.b16 %v167
    %v523 = vunpack.c.h.b16 %v167
    %v524 = vunpack.c.l.b16 %v168
    %v525 = vunpack.c.h.b16 %v168
    %v526 = vunpack.c.l.b16 %v169
    %v527 = vunpack.c.h.b16 %v169
    %v528 = vunpack.c.l.b16 %v170
    %v529 = vunpack.c.h.b16 %v170
    %v530 = vunpack.c.l.b16 %v171
    %v531 = vunpack.c.h.b16 %v171
    %v532 = vunpack.c.l.b16 %v172
    %v533 = vunpack.c.h.b16 %v172
    %v534 = vunpack.c.l.b16 %v173
    %v535 = vunpack.c.h.b16 %v173
    %v536 = vunpack.c.l.b16 %v174
    %v537 = vunpack.c.h.b16 %v174
    %v538 = vunpack.c.l.b16 %v175
    %v539 = vunpack.c.h.b16 %v175
    %v540 = vunpack.c.l.b16 %v176
    %v541 = vunpack.c.h.b16 %v176
    %v542 = vunpack.c.l.b16 %v177
    %v543 = vunpack.c.h.b16 %v177
    %v544 = vunpack.c.l.b16 %v178
    %v545 = vunpack.c.h.b16 %v178
    %v546 = vunpack.c.l.b16 %v179
    %v547 = vunpack.c.h.b16 %v179
    %v548 = vunpack.c.l.b16 %v180
    %v549 = vunpack.c.h.b16 %v180
    %v550 = vunpack.c.l.b16 %v181
    %v551 = vunpack.c.h.b16 %v181
    %v552 = vunpack.c.l.b16 %v182
    %v553 = vunpack.c.h.b16 %v182
    %v554 = vunpack.c.l.b16 %v183
    %v555 = vunpack.c.h.b16 %v183
    %v556 = vunpack.c.l.b16 %v184
    %v557 = vunpack.c.h.b16 %v184
    %v558 = vunpack.c.l.b16 %v185
    %v559 = vunpack.c.h.b16 %v185
    %v560 = vunpack.c.l.b16 %v186
    %v561 = vunpack.c.h.b16 %v186
    %v562 = vunpack.c.l.b16 %v187
    %v563 = vunpack.c.h.b16 %v187
    %v564 = vunpack.c.l.b16 %v188
    %v565 = vunpack.c.h.b16 %v188
    %v566 = vunpack.c.l.b16 %v189
    %v567 = vunpack.c.h.b16 %v189
    %v568 = vunpack.c.l.b16 %v190
    %v569 = vunpack.c.h.b16 %v190
    %v570 = vunpack.c.l.b16 %v191
    %v571 = vunpack.c.h.b16 %v191
    %v572 = vunpack.c.l.b16 %v192
    %v573 = vunpack.c.h.b16 %v192
    %v574 = vunpack.c.l.b16 %v193
    %v575 = vunpack.c.h.b16 %v193
    %v576 = vunpack.c.l.b16 %v194
    %v577 = vunpack.c.h.b16 %v194
    %v578 = vunpack.c.l.b16 %v195
    %v579 = vunpack.c.h.b16 %v195
    %v580 = vunpack.c.l.b16 %v196
    %v581 = vunpack.c.h.b16 %v196
    %v582 = vunpack.c.l.b16 %v197
    %v583 = vunpack.c.h.b16 %v197
    %v584 = vunpack.c.l.b16 %v198
    %v585 = vunpack.c.h.b16 %v198
    %v586 = vunpack.c.l.b16 %v199
    %v587 = vunpack.c.h.b16 %v199
    %v588 = vunpack.c.l.b16 %v200
    %v589 = vunpack.c.h.b16 %v200
    %v590 = vunpack.c.l.b16 %v201
    %v591 = vunpack.c.h.b16 %v201
    %v592 = vunpack.c.l.b16 %v202
    %v593 = vunpack.c.h.b16 %v202
    %v594 = vunpack.c.l.b16 %v203
    %v595 = vunpack.c.h.b16 %v203
    %v596 = vunpack.c.l.b16 %v204
    %v597 = vunpack.c.h.b16 %v204
    %v598 = vunpack.c.l.b16 %v205
    %v599 = vunpack.c.h.b16 %v205
    %v600 = vpack.c.b16 %v352, %v344
    %v601 = vpack.c.b16 %v353, %v345
    %v602 = vpack.c.b16 %v354, %v346
    %v603 = vpack.c.b16 %v355, %v347
    %v604 = vpack.c.b16 %v356, %v348
    %v605 = vpack.c.b16 %v357, %v349
    %v606 = vpack.c.b16 %v358, %v350
    %v607 = vpack.c.b16 %v359, %v351
    %v608 = vpack.c.b16 %v368, %v360
    %v609 = vpack.c.b16 %v369, %v361
    %v610 = vpack.c.b16 %v370, %v362
    %v611 = vpack.c.b16 %v371, %v363
    %v612 = vpack.c.b16 %v372, %v364
    %v613 = vpack.c.b16 %v373, %v365
    %v614 = vpack.c.b16 %v374, %v366
    %v615 = vpack.c.b16 %v375, %v367
    %v616 = vpack.c.b16 %v384, %v376
    %v617 = vpack.c.b16 %v385, %v377
    %v618 = vpack.c.b16 %v386, %v378
    %v619 = vpack.c.b16 %v387, %v379
    %v620 = vpack.c.b16 %v388, %v380
    %v621 = vpack.c.b16 %v389, %v381
    %v622 = vpack.c.b16 %v390, %v382
    %v623 = vpack.c.b16 %v391, %v383
    %v624 = vpack.c.b16 %v400, %v392
    %v625 = vpack.c.b16 %v401, %v393
    %v626 = vpack.c.b16 %v402, %v394
    %v627 = vpack.c.b16 %v403, %v395
    %v628 = vpack.c.b16 %v404, %v396
    %v629 = vpack.c.b16 %v405, %v397
    %v630 = vpack.c.b16 %v406, %v398
    %v631 = vpack.c.b16 %v407, %v399
    %v632 = vpack.c.b16 %v416, %v408
    %v633 = vpack.c.b16 %v417, %v409
    %v634 = vpack.c.b16 %v418, %v410
    %v635 = vpack.c.b16 %v419, %v411
    %v636 = vpack.c.b16 %v420, %v412
    %v637 = vpack.c.b16 %v421, %v413
    %v638 = vpack.c.b16 %v422, %v414
    %v639 = vpack.c.b16 %v423, %v415
    %v640 = vpack.c.b16 %v432, %v424
    %v641 = vpack.c.b16 %v433, %v425
    %v642 = vpack.c.b16 %v434, %v426
    %v643 = vpack.c.b16 %v435, %v427
    %v644 = vpack.c.b16 %v436, %v428
    %v645 = vpack.c.b16 %v437, %v429
    %v646 = vpack.c.b16 %v438, %v430
    %v647 = vpack.c.b16 %v439, %v431
    %v648 = vpack.c.b16 %v448, %v440
    %v649 = vpack.c.b16 %v449, %v441
    %v650 = vpack.c.b16 %v450, %v442
    %v651 = vpack.c.b16 %v451, %v443
    %v652 = vpack.c.b16 %v452, %v444
    %v653 = vpack.c.b16 %v453, %v445
    %v654 = vpack.c.b16 %v454, %v446
    %v655 = vpack.c.b16 %v455, %v447
    %v656 = vpack.c.b16 %v464, %v456
    %v657 = vpack.c.b16 %v465, %v457
    %v658 = vpack.c.b16 %v466, %v458
    %v659 = vpack.c.b16 %v467, %v459
    %v660 = vpack.c.b16 %v468, %v460
    %v661 = vpack.c.b16 %v469, %v461
    %v662 = vpack.c.b16 %v470, %v462
    %v663 = vpack.c.b16 %v471, %v463
    %v664 = vpack.c.b16 %v480, %v472
    %v665 = vpack.c.b16 %v481, %v473
    %v666 = vpack.c.b16 %v482, %v474
    %v667 = vpack.c.b16 %v483, %v475
    %v668 = vpack.c.b16 %v484, %v476
    %v669 = vpack.c.b16 %v485, %v477
    %v670 = vpack.c.b16 %v486, %v478
    %v671 = vpack.c.b16 %v487, %v479
    %v672 = vpack.c.b16 %v496, %v488
    %v673 = vpack.c.b16 %v497, %v489
    %v674 = vpack.c.b16 %v498, %v490
    %v675 = vpack.c.b16 %v499, %v491
    %v676 = vpack.c.b16 %v500, %v492
    %v677 = vpack.c.b16 %v501, %v493
    %v678 = vpack.c.b16 %v502, %v494
    %v679 = vpack.c.b16 %v503, %v495
    %v680 = vpack.c.b16 %v512, %v504
    %v681 = vpack.c.b16 %v513, %v505
    %v682 = vpack.c.b16 %v514, %v506
    %v683 = vpack.c.b16 %v515, %v507
    %v684 = vpack.c.b16 %v516, %v508
    %v685 = vpack.c.b16 %v517, %v509
    %v686 = vpack.c.b16 %v518, %v510
    %v687 = vpack.c.b16 %v519, %v511
    %v688 = vpack.c.b16 %v528, %v520
    %v689 = vpack.c.b16 %v529, %v521
    %v690 = vpack.c.b16 %v530, %v522
    %v691 = vpack.c.b16 %v531, %v523
    %v692 = vpack.c.b16 %v532, %v524
    %v693 = vpack.c.b16 %v533, %v525
    %v694 = vpack.c.b16 %v534, %v526
    %v695 = vpack.c.b16 %v535, %v527
    %v696 = vpack.c.b16 %v544, %v536
    %v697 = vpack.c.b16 %v545, %v537
    %v698 = vpack.c.b16 %v546, %v538
    %v699 = vpack.c.b16 %v547, %v539
    %v700 = vpack.c.b16 %v548, %v540
    %v701 = vpack.c.b16 %v549, %v541
    %v702 = vpack.c.b16 %v550, %v542
    %v703 = vpack.c.b16 %v551, %v543
    %v704 = vpack.c.b16 %v560, %v552
    %v705 = vpack.c.b16 %v561, %v553
    %v706 = vpack.c.b16 %v562, %v554
    %v707 = vpack.c.b16 %v563, %v555
    %v708 = vpack.c.b16 %v564, %v556
    %v709 = vpack.c.b16 %v565, %v557
    %v710 = vpack.c.b16 %v566, %v558
    %v711 = vpack.c.b16 %v567, %v559
    %v712 = vpack.c.b16 %v576, %v568
    %v713 = vpack.c.b16 %v577, %v569
    %v714 = vpack.c.b16 %v578, %v570
    %v715 = vpack.c.b16 %v579, %v571
    %v716 = vpack.c.b16 %v580, %v572
    %v717 = vpack.c.b16 %v581, %v573
    %v718 = vpack.c.b16 %v582, %v574
    %v719 = vpack.c.b16 %v583, %v575
    %v720 = vpack.c.b16 %v592, %v584
    %v721 = vpack.c.b16 %v593, %v585
    %v722 = vpack.c.b16 %v594, %v586
    %v723 = vpack.c.b16 %v595, %v587
    %v724 = vpack.c.b16 %v596, %v588
    %v725 = vpack.c.b16 %v597, %v589
    %v726 = vpack.c.b16 %v598, %v590
    %v727 = vpack.c.b16 %v599, %v591
    %856 = vmatprep.subr.bf16.mxu0 %v601
    %857 = vmatpush1.bf16.msra.mxu0 %v600
    %858 = vmatprep.subr.bf16.mxu0 %v609
    %859 = vmatpush1.bf16.msra.mxu0 %v608
    %860 = vmatprep.subr.bf16.mxu0 %v617
    %861 = vmatpush1.bf16.msra.mxu0 %v616
    %862 = vmatprep.subr.bf16.mxu0 %v625
    %863 = vmatpush1.bf16.msra.mxu0 %v624
    %864 = vmatprep.subr.bf16.mxu0 %v633
    %865 = vmatpush1.bf16.msra.mxu0 %v632
    %866 = vmatprep.subr.bf16.mxu0 %v641
    %867 = vmatpush1.bf16.msra.mxu0 %v640
    %868 = vmatprep.subr.bf16.mxu0 %v649
    %869 = vmatpush1.bf16.msra.mxu0 %v648
    %870 = vmatprep.subr.bf16.mxu0 %v657
    %871 = vmatpush1.bf16.msra.mxu0 %v656
    %872 = vmatprep.subr.bf16.mxu0 %v665
    %873 = vmatpush1.bf16.msra.mxu0 %v664
    %874 = vmatprep.subr.bf16.mxu0 %v673
    %875 = vmatpush1.bf16.msra.mxu0 %v672
    %876 = vmatprep.subr.bf16.mxu0 %v681
    %877 = vmatpush1.bf16.msra.mxu0 %v680
    %878 = vmatprep.subr.bf16.mxu0 %v689
    %879 = vmatpush1.bf16.msra.mxu0 %v688
    %880 = vmatprep.subr.bf16.mxu0 %v697
    %881 = vmatpush1.bf16.msra.mxu0 %v696
    %882 = vmatprep.subr.bf16.mxu0 %v705
    %883 = vmatpush1.bf16.msra.mxu0 %v704
    %884 = vmatprep.subr.bf16.mxu0 %v713
    %885 = vmatpush1.bf16.msra.mxu0 %v712
    %886 = vmatprep.subr.bf16.mxu0 %v721
    %887 = vmatpush1.bf16.msra.mxu0 %v720
    %888 = vmatprep.mubr.bf16.mxu0 %v213
    %889 = vmatmul.mubr.bf16.gmra.mrb[0].mxu0 %v212
    %v890 = vpop.f32.mrb[0].mxu0
    %v891 = vadd.f32 0.0, %v890
    %v892 = vpop.f32.mrb[0].mxu0
    %v893 = vadd.f32 0.0, %v892
    %v894 = vpop.f32.mrb[0].mxu0
    %v895 = vadd.f32 0.0, %v894
    %v896 = vpop.f32.mrb[0].mxu0
    %v897 = vadd.f32 0.0, %v896
    %898 = vdwg.mxu0
    %899 = vmatprep.subr.bf16.mxu0 %v603
    %900 = vmatpush1.bf16.msra.mxu0 %v602
    %901 = vmatprep.subr.bf16.mxu0 %v611
    %902 = vmatpush1.bf16.msra.mxu0 %v610
    %903 = vmatprep.subr.bf16.mxu0 %v619
    %904 = vmatpush1.bf16.msra.mxu0 %v618
    %905 = vmatprep.subr.bf16.mxu0 %v627
    %906 = vmatpush1.bf16.msra.mxu0 %v626
    %907 = vmatprep.subr.bf16.mxu0 %v635
    %908 = vmatpush1.bf16.msra.mxu0 %v634
    %909 = vmatprep.subr.bf16.mxu0 %v643
    %910 = vmatpush1.bf16.msra.mxu0 %v642
    %911 = vmatprep.subr.bf16.mxu0 %v651
    %912 = vmatpush1.bf16.msra.mxu0 %v650
    %913 = vmatprep.subr.bf16.mxu0 %v659
    %914 = vmatpush1.bf16.msra.mxu0 %v658
    %915 = vmatprep.subr.bf16.mxu0 %v667
    %916 = vmatpush1.bf16.msra.mxu0 %v666
    %917 = vmatprep.subr.bf16.mxu0 %v675
    %918 = vmatpush1.bf16.msra.mxu0 %v674
    %919 = vmatprep.subr.bf16.mxu0 %v683
    %920 = vmatpush1.bf16.msra.mxu0 %v682
    %921 = vmatprep.subr.bf16.mxu0 %v691
    %922 = vmatpush1.bf16.msra.mxu0 %v690
    %923 = vmatprep.subr.bf16.mxu0 %v699
    %924 = vmatpush1.bf16.msra.mxu0 %v698
    %925 = vmatprep.subr.bf16.mxu0 %v707
    %926 = vmatpush1.bf16.msra.mxu0 %v706
    %927 = vmatprep.subr.bf16.mxu0 %v715
    %928 = vmatpush1.bf16.msra.mxu0 %v714
    %929 = vmatprep.subr.bf16.mxu0 %v723
    %930 = vmatpush1.bf16.msra.mxu0 %v722
    %931 = vmatprep.mubr.bf16.mxu0 %v213
    %932 = vmatmul.mubr.bf16.gmra.mrb[0].mxu0 %v212
    %v933 = vpop.f32.mrb[0].mxu0
    %v934 = vadd.f32 0.0, %v933
    %v935 = vpop.f32.mrb[0].mxu0
    %v936 = vadd.f32 0.0, %v935
    %v937 = vpop.f32.mrb[0].mxu0
    %v938 = vadd.f32 0.0, %v937
    %v939 = vpop.f32.mrb[0].mxu0
    %v940 = vadd.f32 0.0, %v939
    %941 = vdwg.mxu0
    %942 = vmatprep.subr.bf16.mxu0 %v605
    %943 = vmatpush1.bf16.msra.mxu0 %v604
    %944 = vmatprep.subr.bf16.mxu0 %v613
    %945 = vmatpush1.bf16.msra.mxu0 %v612
    %946 = vmatprep.subr.bf16.mxu0 %v621
    %947 = vmatpush1.bf16.msra.mxu0 %v620
    %948 = vmatprep.subr.bf16.mxu0 %v629
    %949 = vmatpush1.bf16.msra.mxu0 %v628
    %950 = vmatprep.subr.bf16.mxu0 %v637
    %951 = vmatpush1.bf16.msra.mxu0 %v636
    %952 = vmatprep.subr.bf16.mxu0 %v645
    %953 = vmatpush1.bf16.msra.mxu0 %v644
    %954 = vmatprep.subr.bf16.mxu0 %v653
    %955 = vmatpush1.bf16.msra.mxu0 %v652
    %956 = vmatprep.subr.bf16.mxu0 %v661
    %957 = vmatpush1.bf16.msra.mxu0 %v660
    %958 = vmatprep.subr.bf16.mxu0 %v669
    %959 = vmatpush1.bf16.msra.mxu0 %v668
    %960 = vmatprep.subr.bf16.mxu0 %v677
    %961 = vmatpush1.bf16.msra.mxu0 %v676
    %962 = vmatprep.subr.bf16.mxu0 %v685
    %963 = vmatpush1.bf16.msra.mxu0 %v684
    %964 = vmatprep.subr.bf16.mxu0 %v693
    %965 = vmatpush1.bf16.msra.mxu0 %v692
    %966 = vmatprep.subr.bf16.mxu0 %v701
    %967 = vmatpush1.bf16.msra.mxu0 %v700
    %968 = vmatprep.subr.bf16.mxu0 %v709
    %969 = vmatpush1.bf16.msra.mxu0 %v708
    %970 = vmatprep.subr.bf16.mxu0 %v717
    %971 = vmatpush1.bf16.msra.mxu0 %v716
    %972 = vmatprep.subr.bf16.mxu0 %v725
    %973 = vmatpush1.bf16.msra.mxu0 %v724
    %974 = vmatprep.mubr.bf16.mxu0 %v213
    %975 = vmatmul.mubr.bf16.gmra.mrb[0].mxu0 %v212
    %v976 = vpop.f32.mrb[0].mxu0
    %v977 = vadd.f32 0.0, %v976
    %v978 = vpop.f32.mrb[0].mxu0
    %v979 = vadd.f32 0.0, %v978
    %v980 = vpop.f32.mrb[0].mxu0
    %v981 = vadd.f32 0.0, %v980
    %v982 = vpop.f32.mrb[0].mxu0
    %v983 = vadd.f32 0.0, %v982
    %984 = vdwg.mxu0
    %985 = vmatprep.subr.bf16.mxu0 %v607
    %986 = vmatpush1.bf16.msra.mxu0 %v606
    %987 = vmatprep.subr.bf16.mxu0 %v615
    %988 = vmatpush1.bf16.msra.mxu0 %v614
    %989 = vmatprep.subr.bf16.mxu0 %v623
    %990 = vmatpush1.bf16.msra.mxu0 %v622
    %991 = vmatprep.subr.bf16.mxu0 %v631
    %992 = vmatpush1.bf16.msra.mxu0 %v630
    %993 = vmatprep.subr.bf16.mxu0 %v639
    %994 = vmatpush1.bf16.msra.mxu0 %v638
    %995 = vmatprep.subr.bf16.mxu0 %v647
    %996 = vmatpush1.bf16.msra.mxu0 %v646
    %997 = vmatprep.subr.bf16.mxu0 %v655
    %998 = vmatpush1.bf16.msra.mxu0 %v654
    %999 = vmatprep.subr.bf16.mxu0 %v663
    %1000 = vmatpush1.bf16.msra.mxu0 %v662
    %1001 = vmatprep.subr.bf16.mxu0 %v671
    %1002 = vmatpush1.bf16.msra.mxu0 %v670
    %1003 = vmatprep.subr.bf16.mxu0 %v679
    %1004 = vmatpush1.bf16.msra.mxu0 %v678
    %1005 = vmatprep.subr.bf16.mxu0 %v687
    %1006 = vmatpush1.bf16.msra.mxu0 %v686
    %1007 = vmatprep.subr.bf16.mxu0 %v695
    %1008 = vmatpush1.bf16.msra.mxu0 %v694
    %1009 = vmatprep.subr.bf16.mxu0 %v703
    %1010 = vmatpush1.bf16.msra.mxu0 %v702
    %1011 = vmatprep.subr.bf16.mxu0 %v711
    %1012 = vmatpush1.bf16.msra.mxu0 %v710
    %1013 = vmatprep.subr.bf16.mxu0 %v719
    %1014 = vmatpush1.bf16.msra.mxu0 %v718
    %1015 = vmatprep.subr.bf16.mxu0 %v727
    %1016 = vmatpush1.bf16.msra.mxu0 %v726
    %1017 = vmatprep.mubr.bf16.mxu0 %v213
    %1018 = vmatmul.mubr.bf16.gmra.mrb[0].mxu0 %v212
    %v1019 = vpop.f32.mrb[0].mxu0
    %v1020 = vadd.f32 0.0, %v1019
    %v1021 = vpop.f32.mrb[0].mxu0
    %v1022 = vadd.f32 0.0, %v1021
    %v1023 = vpop.f32.mrb[0].mxu0
    %v1024 = vadd.f32 0.0, %v1023
    %v1025 = vpop.f32.mrb[0].mxu0
    %v1026 = vadd.f32 0.0, %v1025
    %1027 = vdwg.mxu0
    %v1028 = vadd.f32 %v60, %v891
    %v1029 = vadd.f32 %v61, %v893
    %v1030 = vadd.f32 %v62, %v934
    %v1031 = vadd.f32 %v63, %v936
    %v1032 = vadd.f32 %v64, %v977
    %v1033 = vadd.f32 %v65, %v979
    %v1034 = vadd.f32 %v66, %v1020
    %v1035 = vadd.f32 %v67, %v1022
    %v1036 = vadd.f32 %v68, %v895
    %v1037 = vadd.f32 %v69, %v897
    %v1038 = vadd.f32 %v70, %v938
    %v1039 = vadd.f32 %v71, %v940
    %v1040 = vadd.f32 %v72, %v981
    %v1041 = vadd.f32 %v73, %v983
    %v1042 = vadd.f32 %v74, %v1024
    %v1043 = vadd.f32 %v75, %v1026
    %1044 = vst [vmem:[#allocation2] sm:$0xff] %v1028
    %1045 = vst [vmem:[#allocation2 + $0x8] sm:$0xff] %v1029
    %1046 = vst [vmem:[#allocation2 + $0x10] sm:$0xff] %v1030
    %1047 = vst [vmem:[#allocation2 + $0x18] sm:$0xff] %v1031
    %1048 = vst [vmem:[#allocation2 + $0x20] sm:$0xff] %v1032
    %1049 = vst [vmem:[#allocation2 + $0x28] sm:$0xff] %v1033
    %1050 = vst [vmem:[#allocation2 + $0x30] sm:$0xff] %v1034
    %1051 = vst [vmem:[#allocation2 + $0x38] sm:$0xff] %v1035
    %1052 = vst [vmem:[#allocation2 + $0x40] sm:$0xff] %v1036
    %1053 = vst [vmem:[#allocation2 + $0x48] sm:$0xff] %v1037
    %1054 = vst [vmem:[#allocation2 + $0x50] sm:$0xff] %v1038
    %1055 = vst [vmem:[#allocation2 + $0x58] sm:$0xff] %v1039
    %1056 = vst [vmem:[#allocation2 + $0x60] sm:$0xff] %v1040
    %1057 = vst [vmem:[#allocation2 + $0x68] sm:$0xff] %v1041
    %1058 = vst [vmem:[#allocation2 + $0x70] sm:$0xff] %v1042
    %1059 = vst [vmem:[#allocation2 + $0x78] sm:$0xff] %v1043
    // Predicated region
    $region22: #{tpu_custom_call.1} parent=1 // pred_check
      %p1060 = pneg %p40
    $region23: #{tpu_custom_call.1} parent=1 // pred_check_branch
      %1062 = sbr.rel (%p1060) target = $region25
    $region24: #{tpu_custom_call.1} parent=1 // pred_region
      %v1063 = vld [vmem:[#allocation2] sm:$0xff]
      %v1064 = vld [vmem:[#allocation2 + $0x8] sm:$0xff]
      %v1065 = vld [vmem:[#allocation2 + $0x10] sm:$0xff]
      %v1066 = vld [vmem:[#allocation2 + $0x18] sm:$0xff]
      %v1067 = vld [vmem:[#allocation2 + $0x20] sm:$0xff]
      %v1068 = vld [vmem:[#allocation2 + $0x28] sm:$0xff]
      %v1069 = vld [vmem:[#allocation2 + $0x30] sm:$0xff]
      %v1070 = vld [vmem:[#allocation2 + $0x38] sm:$0xff]
      %v1071 = vld [vmem:[#allocation2 + $0x40] sm:$0xff]
      %v1072 = vld [vmem:[#allocation2 + $0x48] sm:$0xff]
      %v1073 = vld [vmem:[#allocation2 + $0x50] sm:$0xff]
      %v1074 = vld [vmem:[#allocation2 + $0x58] sm:$0xff]
      %v1075 = vld [vmem:[#allocation2 + $0x60] sm:$0xff]
      %v1076 = vld [vmem:[#allocation2 + $0x68] sm:$0xff]
      %v1077 = vld [vmem:[#allocation2 + $0x70] sm:$0xff]
      %v1078 = vld [vmem:[#allocation2 + $0x78] sm:$0xff]
      %v1079 = vpack.c.bf16 %v1071, %v1063
      %v1080 = vpack.c.bf16 %v1072, %v1064
      %v1081 = vpack.c.bf16 %v1073, %v1065
      %v1082 = vpack.c.bf16 %v1074, %v1066
      %v1083 = vpack.c.bf16 %v1075, %v1067
      %v1084 = vpack.c.bf16 %v1076, %v1068
      %v1085 = vpack.c.bf16 %v1077, %v1069
      %v1086 = vpack.c.bf16 %v1078, %v1070
      %v1095 = vunpack.c.l.b16 %v1079
      %v1096 = vunpack.c.l.b16 %v1080
      %v1097 = vunpack.c.l.b16 %v1081
      %v1098 = vunpack.c.l.b16 %v1082
      %v1099 = vunpack.c.l.b16 %v1083
      %v1100 = vunpack.c.l.b16 %v1084
      %v1101 = vunpack.c.l.b16 %v1085
      %v1102 = vunpack.c.l.b16 %v1086
      %v1103 = vunpack.c.h.b16 %v1079
      %v1104 = vunpack.c.h.b16 %v1080
      %v1105 = vunpack.c.h.b16 %v1081
      %v1106 = vunpack.c.h.b16 %v1082
      %v1107 = vunpack.c.h.b16 %v1083
      %v1108 = vunpack.c.h.b16 %v1084
      %v1109 = vunpack.c.h.b16 %v1085
      %v1110 = vunpack.c.h.b16 %v1086
      %v1111 = vpack.c.b16 %v1096, %v1095
      %v1112 = vpack.c.b16 %v1098, %v1097
      %v1113 = vpack.c.b16 %v1100, %v1099
      %v1114 = vpack.c.b16 %v1102, %v1101
      %v1115 = vpack.c.b16 %v1104, %v1103
      %v1116 = vpack.c.b16 %v1106, %v1105
      %v1117 = vpack.c.b16 %v1108, %v1107
      %v1118 = vpack.c.b16 %v1110, %v1109
      %1127 = vst [vmem:[#allocation8] sm:$0xff] %v1111
      %1128 = vst [vmem:[#allocation8 + $0x8] sm:$0xff] %v1112
      %1129 = vst [vmem:[#allocation8 + $0x10] sm:$0xff] %v1113
      %1130 = vst [vmem:[#allocation8 + $0x18] sm:$0xff] %v1114
      %1131 = vst [vmem:[#allocation8 + $0x20] sm:$0xff] %v1115
      %1132 = vst [vmem:[#allocation8 + $0x28] sm:$0xff] %v1116
      %1133 = vst [vmem:[#allocation8 + $0x30] sm:$0xff] %v1117
      %1134 = vst [vmem:[#allocation8 + $0x38] sm:$0xff] %v1118
    $region25: #{tpu_custom_call.1} parent=1 // pred_fallthru
      _
    // Predicated region
    $region26: #{tpu_custom_call.1} parent=1 // pred_check
      _
    $region27: #{tpu_custom_call.1} parent=1 // pred_check_branch
      %1136 = sbr.rel (0) target = $region29
    $region28: #{tpu_custom_call.1} parent=1 // pred_region
      %s1138 = ssub.s32 1024, 1024
      %1139 = vsyncadd [#allocation5], %s1138
      %s1140 = sshll.u32 [#allocation8], 4
      %s1141 = int_to_ptr.vmem [resolvable:$true] %s1140
      %1146 = dma.vmem_to_hbm [thread:$0]  %s1141, 1024, %s2, [#allocation5], 512, 512, 32
    $region29: #{tpu_custom_call.1} parent=1 // pred_fallthru
      _
    // Predicated region
    $region30: #{tpu_custom_call.1} parent=1 // pred_check
      _
    $region31: #{tpu_custom_call.1} parent=1 // pred_check_branch
      %1148 = sbr.rel (0) target = $region33
    $region32: #{tpu_custom_call.1} parent=1 // pred_region
      %1149 = dma.done [#allocation5], 1024
    $region33: #{tpu_custom_call.1} parent=1 // pred_fallthru
      _
    %1150 = vsyncpa [#allocation4], 1
    %1151 = vsyncpa [#allocation7], 1
    %1152 = vsyncpa [#allocation5], 1

</llo_original>
